<compile_context>
chip_gen: v7x
topology: tpu7x:2x2x1
jax: 0.10.0
libtpu: 0.0.40
codegen_flags: <defaults>
</compile_context>

<pallas_src>
import functools

import numpy as np
import jax
import jax.numpy as jnp
from jax import lax
from jax.experimental import pallas as pl
from jax.experimental.pallas import tpu as pltpu


def _round_up(v, m):
    return -(-v // m) * m


# ----------------------------------------------------------------------------
# Kernel bodies
# ----------------------------------------------------------------------------
def _gap_kernel_single(x_ref, o_ref, *, inv_area):
    # Whole reduction axis in one tile: lane reduce -> scale -> store.  No scratch,
    # no grid phases.  Sum in f32 regardless of input dtype.
    o_ref[...] = (
        jnp.sum(x_ref[...].astype(jnp.float32), axis=1, keepdims=True) * inv_area
    )


def _gap_kernel_multi(x_ref, o_ref, *, inv_area, tk, k_valid, needs_mask):
    # K tiled across the last ("arbitrary") grid axis; accumulate directly into the
    # resident f32 output block (no separate accumulator scratch).
    k = pl.program_id(1)
    x = x_ref[...].astype(jnp.float32)
    if needs_mask:
        # The last K tile sticks past the true K; OOB lanes hold garbage -> zero them.
        col = lax.broadcasted_iota(jnp.int32, x.shape, 1) + k * tk
        x = jnp.where(col < k_valid, x, 0.0)
    part = jnp.sum(x, axis=1, keepdims=True)

    @pl.when(k == 0)
    def _():
        o_ref[...] = part

    @pl.when(k != 0)
    def _():
        o_ref[...] += part

    @pl.when(k == pl.num_programs(1) - 1)
    def _():
        o_ref[...] *= inv_area


# ----------------------------------------------------------------------------
# Wrapper
# ----------------------------------------------------------------------------
def global_avg_pool_2d(x_nchw, *, target_block_bytes=4 * 1024 * 1024):
    """GlobalAveragePooling2D forward: (B, C, H, W) -> (B, C), mean over H, W."""
    B, C, H, W = x_nchw.shape
    M, K = B * C, H * W
    x2 = x_nchw.reshape(M, K)            # contiguous reshape: metadata only, no HBM copy
    itemsize = x2.dtype.itemsize
    k_lanes = _round_up(K, 128)          # per-row lane footprint of a VMEM tile

    cost = pl.CostEstimate(
        flops=M * K, transcendentals=0, bytes_accessed=M * K * itemsize + M * 4
    )
    cparams_kw = dict(vmem_limit_bytes=32 * 1024 * 1024)
    inv_area = 1.0 / float(K)

    # Single-K-tile path whenever even the minimal 8-row strip of full K fits the
    # per-buffer byte budget (true for every realistic GAP head).
    single_k = (8 * k_lanes * itemsize) <= target_block_bytes

    if single_k:
        rows_budget = (target_block_bytes // (k_lanes * itemsize)) // 8 * 8  # >= 8
        if M <= 8:
            tm = M                                  # full-dim block: exempt from /8 rule
        else:
            tm = min(rows_budget, (M // 8) * 8)     # multiple of 8, never exceeds M
            if M >= 16:
                # v7x megacore: keep >= 2 tiles on the parallel M axis.
                tm = min(tm, _round_up(-(-M // 2), 8))
        grid = (pl.cdiv(M, tm),)

        out = pl.pallas_call(
            functools.partial(_gap_kernel_single, inv_area=inv_area),
            out_shape=jax.ShapeDtypeStruct((M, 1), jnp.float32),
            grid_spec=pltpu.PrefetchScalarGridSpec(
                num_scalar_prefetch=0,
                grid=grid,
                in_specs=[pl.BlockSpec((tm, K), lambda i: (i, 0))],   # tk == K: no pad
                out_specs=pl.BlockSpec((tm, 1), lambda i: (i, 0)),
            ),
            compiler_params=pltpu.CompilerParams(
                dimension_semantics=("parallel",), **cparams_kw),
            cost_estimate=cost,
        )(x2)
    else:
        # Huge-K fallback (H*W larger than the byte budget allows in one tile).
        # TODO(synk): for tiny M (B*C <= 8) with huge K, a two-pass reduction folding
        # K into M would let both v7x TensorCores participate.
        tm = M if M <= 8 else 8
        tk = max(128, (target_block_bytes // (max(tm, 8) * itemsize)) // 128 * 128)
        tk = min(tk, k_lanes)
        grid = (pl.cdiv(M, tm), pl.cdiv(K, tk))
        needs_mask = (K % tk) != 0

        out = pl.pallas_call(
            functools.partial(_gap_kernel_multi, inv_area=inv_area,
                              tk=tk, k_valid=K, needs_mask=needs_mask),
            out_shape=jax.ShapeDtypeStruct((M, 1), jnp.float32),
            grid_spec=pltpu.PrefetchScalarGridSpec(
                num_scalar_prefetch=0,
                grid=grid,
                in_specs=[pl.BlockSpec((tm, tk), lambda i, k: (i, k))],
                out_specs=pl.BlockSpec((tm, 1), lambda i, k: (i, 0)),
            ),
            compiler_params=pltpu.CompilerParams(
                dimension_semantics=("parallel", "arbitrary"), **cparams_kw),
            cost_estimate=cost,
        )(x2)

    # PyTorch AdaptiveAvgPool2d preserves the input dtype (bf16 in -> bf16 out).
    return out[:, 0].reshape(B, C).astype(x_nchw.dtype)


# ----------------------------------------------------------------------------
# Pure-JAX reference
# ----------------------------------------------------------------------------
def global_avg_pool_2d_ref(x_nchw):
    return jnp.mean(x_nchw.astype(jnp.float32), axis=(2, 3))


if __name__ == "__main__":
    key = jax.random.PRNGKey(0)
    k0, k1, k2 = jax.random.split(key, 3)

    # Primary test shape from the module spec: (batch=2, channels=4, 16x16).
    x = jax.random.normal(k0, (2, 4, 16, 16), jnp.float32)
    y = jax.block_until_ready(global_avg_pool_2d(x))
    np.testing.assert_allclose(np.asarray(y), np.asarray(global_avg_pool_2d_ref(x)),
                               rtol=1e-5, atol=1e-5)

    # Non-128-aligned spatial size (K=144): exercises the tk == K full-dim block
    # (no padding) plus a 2-tile parallel M axis.
    x3 = jax.random.normal(k1, (2, 8, 12, 12), jnp.float32)
    y3 = jax.block_until_ready(global_avg_pool_2d(x3))
    np.testing.assert_allclose(np.asarray(y3), np.asarray(global_avg_pool_2d_ref(x3)),
                               rtol=1e-5, atol=1e-5)

    # M = 15 (not a multiple of 8): exercises the partial trailing M block
    # (OOB rows clipped on writeback, no padding).
    x4 = jax.random.normal(k2, (3, 5, 16, 16), jnp.float32)
    y4 = jax.block_until_ready(global_avg_pool_2d(x4))
    np.testing.assert_allclose(np.asarray(y4), np.asarray(global_avg_pool_2d_ref(x4)),
                               rtol=1e-5, atol=1e-5)

    # Force the multi-K-tile fallback (tiny byte budget): exact tiling, no mask.
    y5 = jax.block_until_ready(global_avg_pool_2d(x, target_block_bytes=4096))
    np.testing.assert_allclose(np.asarray(y5), np.asarray(global_avg_pool_2d_ref(x)),
                               rtol=1e-5, atol=1e-5)

    # Force the multi-K-tile fallback with a partial (masked) last K tile.
    y6 = jax.block_until_ready(global_avg_pool_2d(x3, target_block_bytes=4096))
    np.testing.assert_allclose(np.asarray(y6), np.asarray(global_avg_pool_2d_ref(x3)),
                               rtol=1e-5, atol=1e-5)

    # bf16 parity: output dtype follows the input dtype (like AdaptiveAvgPool2d).
    xb = x.astype(jnp.bfloat16)
    yb = jax.block_until_ready(global_avg_pool_2d(xb))
    assert yb.dtype == jnp.bfloat16
    np.testing.assert_allclose(np.asarray(yb, dtype=np.float32),
                               np.asarray(global_avg_pool_2d_ref(x)),
                               rtol=2e-2, atol=1e-2)

    print("KERNEL_OK")
</pallas_src>

<mosaic_0001>
module attributes {stable_mosaic.version = 11 : i64} {
  func.func @_gap_kernel_single(%arg0: i32, %arg1: memref<8x256xf32, #tpu.memory_space<vmem>>, %arg2: memref<8x1xf32, #tpu.memory_space<vmem>>) attributes {dimension_semantics = [#tpu.dimension_semantics<parallel>], iteration_bounds = array<i64: 1>, scalar_prefetch = 0 : i64, scratch_operands = 0 : i64, tpu.core_type = #tpu.core_type<tc>, window_params = [{transform_indices = @transform_0, window_bounds = array<i64: 8, 256>}, {transform_indices = @transform_1, window_bounds = array<i64: 8, 1>}]} {
    %c0 = arith.constant 0 : index
    %c0_0 = arith.constant 0 : index
    %0 = vector.load %arg1[%c0, %c0_0] : memref<8x256xf32, #tpu.memory_space<vmem>>, vector<8x256xf32>
    %cst = arith.constant dense<0.000000e+00> : vector<8xf32>
    %1 = vector.multi_reduction <add>, %0, %cst [1] : vector<8x256xf32> to vector<8xf32>
    %2 = vector.shape_cast %1 : vector<8xf32> to vector<8x1xf32>
    %cst_1 = arith.constant 3.906250e-03 : f32
    %3 = vector.broadcast %cst_1 : f32 to vector<8x1xf32>
    %4 = arith.mulf %2, %3 : vector<8x1xf32>
    %c0_2 = arith.constant 0 : index
    %c0_3 = arith.constant 0 : index
    %5 = vector.load %arg2[%c0_2, %c0_3] : memref<8x1xf32, #tpu.memory_space<vmem>>, vector<8x1xf32>
    tpu.vector_store %arg2[%c0_2, %c0_3], %4 {strides = array<i32>} : memref<8x1xf32, #tpu.memory_space<vmem>>, vector<8x1xf32>,
    return
  }
  func.func @transform_0(%arg0: i32) -> (i32, i32) {
    %c0_i32 = arith.constant 0 : i32
    %c0_i32_0 = arith.constant 0 : i32
    return %arg0, %c0_i32 : i32, i32
  }
  func.func @transform_1(%arg0: i32) -> (i32, i32) {
    %c0_i32 = arith.constant 0 : i32
    %c0_i32_0 = arith.constant 0 : i32
    return %arg0, %c0_i32 : i32, i32
  }
}

</mosaic_0001>

<llo_original>
// kernel: tpu_custom_call.1
$region0: #{tpu_custom_call.1}
  #allocation0 [shape = 'u32[]', space=smem, size = 0x4, offset = 0x4, fixed_abs, tag = 'smem constant byte address 0x4 - core index']
  #allocation1 [shape = 'u32[144,128]{1,0:T(1,128)}', space=vmem, size = 0x12000, scoped, tag = 'internal scratch']
  %s0 = inlined_call_operand.hbm [shape: f32[8,256], index: 0, kind: input, shape index: {}]
  %s1 = inlined_call_operand.vmem [shape: f32[8,1], index: 1, kind: output, shape index: {}]
  %s2 = sld [smem:[#allocation0]]
  $region18: #{tpu_custom_call.1} parent=0
    _
  %s4 = ssub.s32 1, %s2
  %s5 = scalar_select 0, %s4, %s2
  $region1: #{tpu_custom_call.1} parent=0
    #allocation2 [shape = 'u8[8192]{0}', space=vmem, size = 0x2000, scoped, tag = 'input window, operand 0, single buffered']
    #allocation3 [shape = 's32[1]{0}', space=sflag, size = 0x4, scoped, tag = 'scoped memory for tpu_custom_call.1']
    %6 = vsyncpa [#allocation3], 0
    // Predicated region
    $region2: #{tpu_custom_call.1} parent=1 // pred_check
      _
    $region3: #{tpu_custom_call.1} parent=1 // pred_check_branch
      %8 = sbr.rel (0) target = $region5
    $region4: #{tpu_custom_call.1} parent=1 // pred_region
      %s10 = ssub.s32 256, 256
      %11 = vsyncadd [#allocation3], %s10
      %s13 = sshll.u32 [#allocation2], 4
      %s14 = int_to_ptr.vmem [resolvable:$true] %s13
      %16 = dma.hbm_to_vmem [thread:$0]  %s0, 256, %s14, [#allocation3]
    $region5: #{tpu_custom_call.1} parent=1 // pred_fallthru
      _
    // Predicated region
    $region6: #{tpu_custom_call.1} parent=1 // pred_check
      _
    $region7: #{tpu_custom_call.1} parent=1 // pred_check_branch
      %18 = sbr.rel (0) target = $region9
    $region8: #{tpu_custom_call.1} parent=1 // pred_region
      %19 = dma.done [#allocation3], 256
    $region9: #{tpu_custom_call.1} parent=1 // pred_fallthru
      _
    %v20 = vld [vmem:[#allocation2] sm:$0xff]
    %v21 = vld [vmem:[#allocation2 + $0x8] sm:$0xff]
    %v22 = vadd.f32 %v20, %v21
    %23 = vadd.xlane.f32.xlu0 %v22
    %v24 = vpop.xlane.xlu0 %23
    %v25 = vmul.f32 %v24, 0.00390625
    %vm26 = vcmask 7168
    %27 = vst.msk [vmem:[%s1] sm:$0xff] %vm26, %v25
    // Predicated region
    $region10: #{tpu_custom_call.1} parent=1 // pred_check
      _
    $region11: #{tpu_custom_call.1} parent=1 // pred_check_branch
      %29 = sbr.rel (0) target = $region13
    $region12: #{tpu_custom_call.1} parent=1 // pred_region
      _
    $region13: #{tpu_custom_call.1} parent=1 // pred_fallthru
      _
    // Predicated region
    $region14: #{tpu_custom_call.1} parent=1 // pred_check
      _
    $region15: #{tpu_custom_call.1} parent=1 // pred_check_branch
      %31 = sbr.rel (0) target = $region17
    $region16: #{tpu_custom_call.1} parent=1 // pred_region
      _
    $region17: #{tpu_custom_call.1} parent=1 // pred_fallthru
      _
    %32 = vsyncpa [#allocation3], 1

</llo_original>
